<compile_context>
chip_gen: v7x
topology: tpu7x:2x2x1
jax: 0.10.0
libtpu: 0.0.40
codegen_flags: <defaults>
</compile_context>

<pallas_src>
import jax
import jax.numpy as jnp
from jax.experimental import pallas as pl
from jax.experimental.pallas import tpu as pltpu


def _round_up(x, m):
    return -(-x // m) * m


def _vmem_budget_bytes():
    """~75% of physical VMEM: 48 MiB on v7x (64 MiB), 96 MiB on v5e/v6e (128 MiB)."""
    try:
        cap = int(pltpu.get_tpu_info().vmem_capacity_bytes)
    except Exception:
        cap = 64 * 2**20                    # conservative fallback (v7x-sized)
    return int(min((cap * 3) // 4, 100 * 2**20))


def _pick_tiles(Lout, Wp, Cin, Cout_p, in_item, out_item, budget):
    """Pick (TL, TLh): lane tile and halo tile, multiples of 128, TL % TLh == 0."""
    TLh = 128 * (-(-(Wp + 2) // 128))       # halo width > max tap offset (Wp+1)
    fixed = (2 * 4 * Cin * TLh * in_item                      # halo block (x2 buf)
             + 2 * (9 * Cin * Cout_p * in_item + Cout_p * 4)  # weights + bias (x2 buf)
             + (2 << 20))                                     # compiler headroom
    per_lane = (2 * 4 * Cin * in_item       # main block (double-buffered)
                + 2 * Cout_p * out_item     # output block (double-buffered)
                + Cout_p * 4                # f32 accumulator
                + 2 * Cin * in_item)        # shifted-tap temporaries
    tl_budget = max(budget - fixed, per_lane * TLh) // per_lane
    tl_cap = max(8192 // TLh, 4) * TLh
    tl = min(tl_budget // TLh * TLh, tl_cap, _round_up(Lout, TLh))
    return max(tl, TLh), TLh


def _make_kernel(Cin, TL, Wp):
    # Static tap table: tap (kh, kw) lives in phase block ph = (kh%2)*2 + (kw%2)
    # of the lane-flattened phase array, at lane offset (kh//2)*Wp + (kw//2).
    taps = []
    for kh in range(3):
        for kw in range(3):
            taps.append(((kh % 2) * 2 + (kw % 2), (kh // 2) * Wp + (kw // 2)))

    def kernel(main_ref, halo_ref, w_ref, b_ref, o_ref):
        # main_ref: (1, 4*Cin, TL)   bf16  phase lanes [t*TL, t*TL+TL)
        # halo_ref: (1, 4*Cin, TLh)  bf16  phase lanes [(t+1)*TL, (t+1)*TL+TLh)
        # w_ref   : (9, Cout_p, Cin) bf16  per-tap weights (weight_norm + gamma folded)
        # b_ref   : (Cout_p, 1)      f32   fused bias = gamma*bias + beta
        # o_ref   : (1, Cout_p, TL)        lane-dense output tile
        acc = None
        for t, (ph, off) in enumerate(taps):
            rows = pl.ds(ph * Cin, Cin)
            if off == 0:
                piece = main_ref[0, rows, :]
            else:
                # on-chip tap gather: shifted slice of this tile + halo tail
                piece = jnp.concatenate(
                    [main_ref[0, rows, pl.ds(off, TL - off)],
                     halo_ref[0, rows, pl.ds(0, off)]], axis=-1)
            d = jnp.dot(w_ref[t], piece, preferred_element_type=jnp.float32)
            acc = d if acc is None else acc + d
        o_ref[0] = (acc + b_ref[...]).astype(o_ref.dtype)

    return kernel


def downsample_forward(x, v, g, bias, gamma, beta, *, stride=2, padding=1,
                       compute_dtype=jnp.bfloat16):
    """Downsample.forward with NormConv2d(kernel=3, stride=2, pad=1), batch_norm=False.

    x: (N, Cin, H, W) NCHW; v, g: weight_norm parameters; bias: conv bias;
    gamma, beta: NormConv2d learned affine.  Returns NCHW output, dtype of x.
    """
    N, Cin, H, W = x.shape
    Cout, Cin_w, K, K2 = v.shape
    assert K == 3 and K2 == 3 and Cin_w == Cin
    assert stride == 2 and padding == 1

    f32 = jnp.float32
    gamma = gamma.reshape(-1).astype(f32)
    beta = beta.reshape(-1).astype(f32)
    bias = bias.reshape(-1).astype(f32)

    # ---- fold weight_norm + gamma into W; gamma*bias + beta into one bias ----
    vf = v.astype(f32)
    norm = jnp.sqrt(jnp.sum(vf * vf, axis=(1, 2, 3), keepdims=True))
    w = (g.reshape(Cout, 1, 1, 1).astype(f32) / norm) * vf          # weight_norm
    w = gamma.reshape(Cout, 1, 1, 1) * w                            # fold gamma
    bias_eff = gamma * bias + beta                                  # (Cout,)

    out_dtype = x.dtype
    in_item = jnp.dtype(compute_dtype).itemsize
    out_item = jnp.dtype(out_dtype).itemsize
    sub_pack = 8 if out_item >= 4 else 16
    Cout_p = _round_up(Cout, sub_pack)

    Ho = (H + 2 * padding - K) // stride + 1
    Wo = (W + 2 * padding - K) // stride + 1
    Hp, Wp = Ho + 1, Wo + 1
    Lp = Hp * Wp                  # flattened phase length (incl. halo row/col)
    Lout = Ho * Wp                # flat output length incl. one phantom column/row

    budget = _vmem_budget_bytes()
    TL, TLh = _pick_tiles(Lout, Wp, Cin, Cout_p, in_item, out_item, budget)
    Lout_pad = _round_up(Lout, TL)
    n_t = Lout_pad // TL
    Lin_pad = Lout_pad + TLh
    R = TL // TLh

    # ---- 4 stride-phase decimated copies of the padded input (NOT a 9x im2col).
    # phases[ph][n,ci,i,j] = xpad[n, ci, (ph//2)+2i, (ph%2)+2j]; after lane
    # flattening, tap (kh,kw) is a contiguous slice at offset (kh//2)*Wp+(kw//2).
    xp = jnp.pad(x, ((0, 0), (0, 0), (padding, padding + 1), (padding, padding + 1)))
    phs = [xp[:, :, pr:pr + 2 * Hp:2, pc:pc + 2 * Wp:2]
           for pr in (0, 1) for pc in (0, 1)]                       # 4 x (N,Cin,Hp,Wp)
    ph = jnp.stack(phs, axis=1).reshape(N, 4 * Cin, Lp).astype(compute_dtype)
    ph = jnp.pad(ph, ((0, 0), (0, 0), (0, Lin_pad - Lp)))

    # per-tap weight matrices (9, Cout_p, Cin), tap index = kh*3 + kw
    w9 = jnp.transpose(w, (2, 3, 0, 1)).reshape(9, Cout, Cin)
    w9 = jnp.pad(w9, ((0, 0), (0, Cout_p - Cout), (0, 0))).astype(compute_dtype)
    b_eff = jnp.pad(bias_eff, (0, Cout_p - Cout)).reshape(Cout_p, 1)

    kernel = _make_kernel(Cin, TL, Wp)

    cost = pl.CostEstimate(
        flops=2 * N * Cout * 9 * Cin * Ho * Wo,
        transcendentals=0,
        bytes_accessed=(ph.size * in_item + w9.size * in_item + b_eff.size * 4
                        + N * Cout_p * Lout_pad * out_item),
    )

    out_flat = pl.pallas_call(
        kernel,
        out_shape=jax.ShapeDtypeStruct((N, Cout_p, Lout_pad), out_dtype),
        grid=(N, n_t),
        in_specs=[
            pl.BlockSpec((1, 4 * Cin, TL), lambda n, t: (n, 0, t)),          # main
            pl.BlockSpec((1, 4 * Cin, TLh), lambda n, t: (n, 0, (t + 1) * R)),  # halo
            pl.BlockSpec((9, Cout_p, Cin), lambda n, t: (0, 0, 0)),          # weights
            pl.BlockSpec((Cout_p, 1), lambda n, t: (0, 0)),                  # bias
        ],
        out_specs=pl.BlockSpec((1, Cout_p, TL), lambda n, t: (n, 0, t)),
        compiler_params=pltpu.CompilerParams(
            dimension_semantics=("parallel", "parallel"),
            vmem_limit_bytes=budget,
        ),
        cost_estimate=cost,
    )(ph, ph, w9, b_eff)

    # Drop padded channels/lanes and the phantom column; output is already NCHW.
    out = out_flat[:, :Cout, :Lout].reshape(N, Cout, Ho, Wp)[:, :, :, :Wo]
    return out


if __name__ == "__main__":
    key = jax.random.PRNGKey(0)
    kx, kv, kg, kb, kgam, kbet = jax.random.split(key, 6)

    N, C, H, W = 2, 4, 16, 16       # batch=2, channels=4, spatial=16
    Cout, K = C, 3                  # out_channels=None -> out_channels = channels

    x     = jax.random.normal(kx, (N, C, H, W), jnp.float32)
    v     = jax.random.normal(kv, (Cout, C, K, K), jnp.float32) * 0.2   # weight_norm "v"
    g     = 1.0 + 0.1 * jax.random.normal(kg, (Cout,), jnp.float32)     # weight_norm "g"
    bias  = 0.1 * jax.random.normal(kb, (Cout,), jnp.float32)           # conv bias
    gamma = 1.0 + 0.1 * jax.random.normal(kgam, (Cout,), jnp.float32)   # NormConv2d gamma
    beta  = 0.1 * jax.random.normal(kbet, (Cout,), jnp.float32)         # NormConv2d beta

    out = downsample_forward(x, v, g, bias, gamma, beta)
    out = jax.block_until_ready(out)
    assert out.shape == (N, Cout, H // 2, W // 2), out.shape

    # ---- reference 1: identical math (bf16-staged operands, f32 accumulation) ----
    f32 = jnp.float32
    norm = jnp.sqrt(jnp.sum(v.astype(f32) ** 2, axis=(1, 2, 3), keepdims=True))
    w_n = g.reshape(Cout, 1, 1, 1) * v.astype(f32) / norm
    w_fold = gamma.reshape(Cout, 1, 1, 1) * w_n
    bias_eff = gamma * bias + beta
    xb = x.astype(jnp.bfloat16).astype(f32)
    wb = w_fold.astype(jnp.bfloat16).astype(f32)
    ref_bf16 = jax.lax.conv_general_dilated(
        xb, wb, window_strides=(2, 2), padding=((1, 1), (1, 1)),
        dimension_numbers=("NCHW", "OIHW", "NCHW"),
        precision=jax.lax.Precision.HIGHEST) + bias_eff.reshape(1, Cout, 1, 1)
    err = float(jnp.max(jnp.abs(out - ref_bf16)))
    assert err < 1e-3, f"kernel vs bf16-staged reference: max err {err}"

    # ---- reference 2: f32 module semantics (loose: allows bf16 staging error) ----
    ref_f32 = jax.lax.conv_general_dilated(
        x, w_n, window_strides=(2, 2), padding=((1, 1), (1, 1)),
        dimension_numbers=("NCHW", "OIHW", "NCHW"),
        precision=jax.lax.Precision.HIGHEST)
    ref_f32 = gamma.reshape(1, Cout, 1, 1) * (ref_f32 + bias.reshape(1, Cout, 1, 1)) \
              + beta.reshape(1, Cout, 1, 1)
    err2 = float(jnp.max(jnp.abs(out - ref_f32)))
    assert err2 < 1e-1, f"kernel vs f32 module reference: max err {err2}"

    print("KERNEL_OK")
</pallas_src>

<mosaic_0001>
module attributes {stable_mosaic.version = 11 : i64} {
  func.func @kernel(%arg0: i32, %arg1: i32, %arg2: memref<1x16x128xbf16, #tpu.memory_space<vmem>>, %arg3: memref<1x16x128xbf16, #tpu.memory_space<vmem>>, %arg4: memref<9x8x4xbf16, #tpu.memory_space<vmem>>, %arg5: memref<8x1xf32, #tpu.memory_space<vmem>>, %arg6: memref<1x8x128xf32, #tpu.memory_space<vmem>>) attributes {dimension_semantics = [#tpu.dimension_semantics<parallel>, #tpu.dimension_semantics<parallel>], iteration_bounds = array<i64: 2, 1>, scalar_prefetch = 0 : i64, scratch_operands = 0 : i64, tpu.core_type = #tpu.core_type<tc>, window_params = [{transform_indices = @transform_0, window_bounds = array<i64: 1, 16, 128>}, {transform_indices = @transform_1, window_bounds = array<i64: 1, 16, 128>}, {pipeline_mode = #tpu.pipeline_mode<synchronous>, transform_indices = @transform_2, window_bounds = array<i64: 9, 8, 4>}, {pipeline_mode = #tpu.pipeline_mode<synchronous>, transform_indices = @transform_3, window_bounds = array<i64: 8, 1>}, {transform_indices = @transform_4, window_bounds = array<i64: 1, 8, 128>}]} {
    %c0 = arith.constant 0 : index
    %c0_0 = arith.constant 0 : index
    %c0_1 = arith.constant 0 : index
    %0 = vector.load %arg2[%c0, %c0_0, %c0_1] : memref<1x16x128xbf16, #tpu.memory_space<vmem>>, vector<1x4x128xbf16>
    %1 = vector.shape_cast %0 : vector<1x4x128xbf16> to vector<4x128xbf16>
    %c0_2 = arith.constant 0 : index
    %c0_3 = arith.constant 0 : index
    %c0_4 = arith.constant 0 : index
    %2 = vector.load %arg4[%c0_2, %c0_3, %c0_4] : memref<9x8x4xbf16, #tpu.memory_space<vmem>>, vector<1x8x4xbf16>
    %3 = vector.shape_cast %2 : vector<1x8x4xbf16> to vector<8x4xbf16>
    %cst = arith.constant dense<0.000000e+00> : vector<8x128xf32>
    %4 = tpu.matmul %3, %1, %cst {dimension_numbers = #tpu.dot_dimension_numbers<[1], [0], [0], [1], [0, 0, 1, 1], [], []>} : vector<8x4xbf16>, vector<4x128xbf16>, vector<8x128xf32> -> vector<8x128xf32>
    %c0_5 = arith.constant 0 : index
    %c4 = arith.constant 4 : index
    %c0_6 = arith.constant 0 : index
    %5 = vector.load %arg2[%c0_5, %c4, %c0_6] : memref<1x16x128xbf16, #tpu.memory_space<vmem>>, vector<1x4x128xbf16>
    %6 = vector.shape_cast %5 : vector<1x4x128xbf16> to vector<4x128xbf16>
    %c1 = arith.constant 1 : index
    %c0_7 = arith.constant 0 : index
    %c0_8 = arith.constant 0 : index
    %7 = vector.load %arg4[%c1, %c0_7, %c0_8] : memref<9x8x4xbf16, #tpu.memory_space<vmem>>, vector<1x8x4xbf16>
    %8 = vector.shape_cast %7 : vector<1x8x4xbf16> to vector<8x4xbf16>
    %cst_9 = arith.constant dense<0.000000e+00> : vector<8x128xf32>
    %9 = tpu.matmul %8, %6, %cst_9 {dimension_numbers = #tpu.dot_dimension_numbers<[1], [0], [0], [1], [0, 0, 1, 1], [], []>} : vector<8x4xbf16>, vector<4x128xbf16>, vector<8x128xf32> -> vector<8x128xf32>
    %10 = arith.addf %4, %9 : vector<8x128xf32>
    %c0_10 = arith.constant 0 : index
    %c0_11 = arith.constant 0 : index
    %c1_12 = arith.constant 1 : index
    %11 = vector.load %arg2[%c0_10, %c0_11, %c1_12] : memref<1x16x128xbf16, #tpu.memory_space<vmem>>, vector<1x4x127xbf16>
    %12 = vector.shape_cast %11 : vector<1x4x127xbf16> to vector<4x127xbf16>
    %c0_13 = arith.constant 0 : index
    %c0_14 = arith.constant 0 : index
    %c0_15 = arith.constant 0 : index
    %13 = vector.load %arg3[%c0_13, %c0_14, %c0_15] : memref<1x16x128xbf16, #tpu.memory_space<vmem>>, vector<1x4x1xbf16>
    %14 = vector.shape_cast %13 : vector<1x4x1xbf16> to vector<4x1xbf16>
    %15 = tpu.concatenate %12, %14 in 1 : vector<4x127xbf16>, vector<4x1xbf16> -> vector<4x128xbf16>
    %c2 = arith.constant 2 : index
    %c0_16 = arith.constant 0 : index
    %c0_17 = arith.constant 0 : index
    %16 = vector.load %arg4[%c2, %c0_16, %c0_17] : memref<9x8x4xbf16, #tpu.memory_space<vmem>>, vector<1x8x4xbf16>
    %17 = vector.shape_cast %16 : vector<1x8x4xbf16> to vector<8x4xbf16>
    %cst_18 = arith.constant dense<0.000000e+00> : vector<8x128xf32>
    %18 = tpu.matmul %17, %15, %cst_18 {dimension_numbers = #tpu.dot_dimension_numbers<[1], [0], [0], [1], [0, 0, 1, 1], [], []>} : vector<8x4xbf16>, vector<4x128xbf16>, vector<8x128xf32> -> vector<8x128xf32>
    %19 = arith.addf %10, %18 : vector<8x128xf32>
    %c0_19 = arith.constant 0 : index
    %c8 = arith.constant 8 : index
    %c0_20 = arith.constant 0 : index
    %20 = vector.load %arg2[%c0_19, %c8, %c0_20] : memref<1x16x128xbf16, #tpu.memory_space<vmem>>, vector<1x4x128xbf16>
    %21 = vector.shape_cast %20 : vector<1x4x128xbf16> to vector<4x128xbf16>
    %c3 = arith.constant 3 : index
    %c0_21 = arith.constant 0 : index
    %c0_22 = arith.constant 0 : index
    %22 = vector.load %arg4[%c3, %c0_21, %c0_22] : memref<9x8x4xbf16, #tpu.memory_space<vmem>>, vector<1x8x4xbf16>
    %23 = vector.shape_cast %22 : vector<1x8x4xbf16> to vector<8x4xbf16>
    %cst_23 = arith.constant dense<0.000000e+00> : vector<8x128xf32>
    %24 = tpu.matmul %23, %21, %cst_23 {dimension_numbers = #tpu.dot_dimension_numbers<[1], [0], [0], [1], [0, 0, 1, 1], [], []>} : vector<8x4xbf16>, vector<4x128xbf16>, vector<8x128xf32> -> vector<8x128xf32>
    %25 = arith.addf %19, %24 : vector<8x128xf32>
    %c0_24 = arith.constant 0 : index
    %c12 = arith.constant 12 : index
    %c0_25 = arith.constant 0 : index
    %26 = vector.load %arg2[%c0_24, %c12, %c0_25] : memref<1x16x128xbf16, #tpu.memory_space<vmem>>, vector<1x4x128xbf16>
    %27 = vector.shape_cast %26 : vector<1x4x128xbf16> to vector<4x128xbf16>
    %c4_26 = arith.constant 4 : index
    %c0_27 = arith.constant 0 : index
    %c0_28 = arith.constant 0 : index
    %28 = vector.load %arg4[%c4_26, %c0_27, %c0_28] : memref<9x8x4xbf16, #tpu.memory_space<vmem>>, vector<1x8x4xbf16>
    %29 = vector.shape_cast %28 : vector<1x8x4xbf16> to vector<8x4xbf16>
    %cst_29 = arith.constant dense<0.000000e+00> : vector<8x128xf32>
    %30 = tpu.matmul %29, %27, %cst_29 {dimension_numbers = #tpu.dot_dimension_numbers<[1], [0], [0], [1], [0, 0, 1, 1], [], []>} : vector<8x4xbf16>, vector<4x128xbf16>, vector<8x128xf32> -> vector<8x128xf32>
    %31 = arith.addf %25, %30 : vector<8x128xf32>
    %c0_30 = arith.constant 0 : index
    %c8_31 = arith.constant 8 : index
    %c1_32 = arith.constant 1 : index
    %32 = vector.load %arg2[%c0_30, %c8_31, %c1_32] : memref<1x16x128xbf16, #tpu.memory_space<vmem>>, vector<1x4x127xbf16>
    %33 = vector.shape_cast %32 : vector<1x4x127xbf16> to vector<4x127xbf16>
    %c0_33 = arith.constant 0 : index
    %c8_34 = arith.constant 8 : index
    %c0_35 = arith.constant 0 : index
    %34 = vector.load %arg3[%c0_33, %c8_34, %c0_35] : memref<1x16x128xbf16, #tpu.memory_space<vmem>>, vector<1x4x1xbf16>
    %35 = vector.shape_cast %34 : vector<1x4x1xbf16> to vector<4x1xbf16>
    %36 = tpu.concatenate %33, %35 in 1 : vector<4x127xbf16>, vector<4x1xbf16> -> vector<4x128xbf16>
    %c5 = arith.constant 5 : index
    %c0_36 = arith.constant 0 : index
    %c0_37 = arith.constant 0 : index
    %37 = vector.load %arg4[%c5, %c0_36, %c0_37] : memref<9x8x4xbf16, #tpu.memory_space<vmem>>, vector<1x8x4xbf16>
    %38 = vector.shape_cast %37 : vector<1x8x4xbf16> to vector<8x4xbf16>
    %cst_38 = arith.constant dense<0.000000e+00> : vector<8x128xf32>
    %39 = tpu.matmul %38, %36, %cst_38 {dimension_numbers = #tpu.dot_dimension_numbers<[1], [0], [0], [1], [0, 0, 1, 1], [], []>} : vector<8x4xbf16>, vector<4x128xbf16>, vector<8x128xf32> -> vector<8x128xf32>
    %40 = arith.addf %31, %39 : vector<8x128xf32>
    %c0_39 = arith.constant 0 : index
    %c0_40 = arith.constant 0 : index
    %c9 = arith.constant 9 : index
    %41 = vector.load %arg2[%c0_39, %c0_40, %c9] : memref<1x16x128xbf16, #tpu.memory_space<vmem>>, vector<1x4x119xbf16>
    %42 = vector.shape_cast %41 : vector<1x4x119xbf16> to vector<4x119xbf16>
    %c0_41 = arith.constant 0 : index
    %c0_42 = arith.constant 0 : index
    %c0_43 = arith.constant 0 : index
    %43 = vector.load %arg3[%c0_41, %c0_42, %c0_43] : memref<1x16x128xbf16, #tpu.memory_space<vmem>>, vector<1x4x9xbf16>
    %44 = vector.shape_cast %43 : vector<1x4x9xbf16> to vector<4x9xbf16>
    %45 = tpu.concatenate %42, %44 in 1 : vector<4x119xbf16>, vector<4x9xbf16> -> vector<4x128xbf16>
    %c6 = arith.constant 6 : index
    %c0_44 = arith.constant 0 : index
    %c0_45 = arith.constant 0 : index
    %46 = vector.load %arg4[%c6, %c0_44, %c0_45] : memref<9x8x4xbf16, #tpu.memory_space<vmem>>, vector<1x8x4xbf16>
    %47 = vector.shape_cast %46 : vector<1x8x4xbf16> to vector<8x4xbf16>
    %cst_46 = arith.constant dense<0.000000e+00> : vector<8x128xf32>
    %48 = tpu.matmul %47, %45, %cst_46 {dimension_numbers = #tpu.dot_dimension_numbers<[1], [0], [0], [1], [0, 0, 1, 1], [], []>} : vector<8x4xbf16>, vector<4x128xbf16>, vector<8x128xf32> -> vector<8x128xf32>
    %49 = arith.addf %40, %48 : vector<8x128xf32>
    %c0_47 = arith.constant 0 : index
    %c4_48 = arith.constant 4 : index
    %c9_49 = arith.constant 9 : index
    %50 = vector.load %arg2[%c0_47, %c4_48, %c9_49] : memref<1x16x128xbf16, #tpu.memory_space<vmem>>, vector<1x4x119xbf16>
    %51 = vector.shape_cast %50 : vector<1x4x119xbf16> to vector<4x119xbf16>
    %c0_50 = arith.constant 0 : index
    %c4_51 = arith.constant 4 : index
    %c0_52 = arith.constant 0 : index
    %52 = vector.load %arg3[%c0_50, %c4_51, %c0_52] : memref<1x16x128xbf16, #tpu.memory_space<vmem>>, vector<1x4x9xbf16>
    %53 = vector.shape_cast %52 : vector<1x4x9xbf16> to vector<4x9xbf16>
    %54 = tpu.concatenate %51, %53 in 1 : vector<4x119xbf16>, vector<4x9xbf16> -> vector<4x128xbf16>
    %c7 = arith.constant 7 : index
    %c0_53 = arith.constant 0 : index
    %c0_54 = arith.constant 0 : index
    %55 = vector.load %arg4[%c7, %c0_53, %c0_54] : memref<9x8x4xbf16, #tpu.memory_space<vmem>>, vector<1x8x4xbf16>
    %56 = vector.shape_cast %55 : vector<1x8x4xbf16> to vector<8x4xbf16>
    %cst_55 = arith.constant dense<0.000000e+00> : vector<8x128xf32>
    %57 = tpu.matmul %56, %54, %cst_55 {dimension_numbers = #tpu.dot_dimension_numbers<[1], [0], [0], [1], [0, 0, 1, 1], [], []>} : vector<8x4xbf16>, vector<4x128xbf16>, vector<8x128xf32> -> vector<8x128xf32>
    %58 = arith.addf %49, %57 : vector<8x128xf32>
    %c0_56 = arith.constant 0 : index
    %c0_57 = arith.constant 0 : index
    %c10 = arith.constant 10 : index
    %59 = vector.load %arg2[%c0_56, %c0_57, %c10] : memref<1x16x128xbf16, #tpu.memory_space<vmem>>, vector<1x4x118xbf16>
    %60 = vector.shape_cast %59 : vector<1x4x118xbf16> to vector<4x118xbf16>
    %c0_58 = arith.constant 0 : index
    %c0_59 = arith.constant 0 : index
    %c0_60 = arith.constant 0 : index
    %61 = vector.load %arg3[%c0_58, %c0_59, %c0_60] : memref<1x16x128xbf16, #tpu.memory_space<vmem>>, vector<1x4x10xbf16>
    %62 = vector.shape_cast %61 : vector<1x4x10xbf16> to vector<4x10xbf16>
    %63 = tpu.concatenate %60, %62 in 1 : vector<4x118xbf16>, vector<4x10xbf16> -> vector<4x128xbf16>
    %c8_61 = arith.constant 8 : index
    %c0_62 = arith.constant 0 : index
    %c0_63 = arith.constant 0 : index
    %64 = vector.load %arg4[%c8_61, %c0_62, %c0_63] : memref<9x8x4xbf16, #tpu.memory_space<vmem>>, vector<1x8x4xbf16>
    %65 = vector.shape_cast %64 : vector<1x8x4xbf16> to vector<8x4xbf16>
    %cst_64 = arith.constant dense<0.000000e+00> : vector<8x128xf32>
    %66 = tpu.matmul %65, %63, %cst_64 {dimension_numbers = #tpu.dot_dimension_numbers<[1], [0], [0], [1], [0, 0, 1, 1], [], []>} : vector<8x4xbf16>, vector<4x128xbf16>, vector<8x128xf32> -> vector<8x128xf32>
    %67 = arith.addf %58, %66 : vector<8x128xf32>
    %c0_65 = arith.constant 0 : index
    %c0_66 = arith.constant 0 : index
    %68 = vector.load %arg5[%c0_65, %c0_66] : memref<8x1xf32, #tpu.memory_space<vmem>>, vector<8x1xf32>
    %69 = vector.broadcast %68 : vector<8x1xf32> to vector<8x128xf32>
    %70 = arith.addf %67, %69 : vector<8x128xf32>
    %c0_67 = arith.constant 0 : index
    %c0_68 = arith.constant 0 : index
    %c0_69 = arith.constant 0 : index
    %71 = vector.load %arg6[%c0_67, %c0_68, %c0_69] : memref<1x8x128xf32, #tpu.memory_space<vmem>>, vector<1x8x128xf32>
    %72 = vector.shape_cast %71 : vector<1x8x128xf32> to vector<8x128xf32>
    %73 = vector.shape_cast %70 : vector<8x128xf32> to vector<1x8x128xf32>
    tpu.vector_store %arg6[%c0_67, %c0_68, %c0_69], %73 {strides = array<i32>} : memref<1x8x128xf32, #tpu.memory_space<vmem>>, vector<1x8x128xf32>,
    return
  }
  func.func @transform_0(%arg0: i32, %arg1: i32) -> (i32, i32, i32) {
    %c0_i32 = arith.constant 0 : i32
    %c0_i32_0 = arith.constant 0 : i32
    return %arg0, %c0_i32, %arg1 : i32, i32, i32
  }
  func.func @transform_1(%arg0: i32, %arg1: i32) -> (i32, i32, i32) {
    %c1_i32 = arith.constant 1 : i32
    %0 = arith.addi %arg1, %c1_i32 : i32
    %c1_i32_0 = arith.constant 1 : i32
    %1 = arith.muli %0, %c1_i32_0 : i32
    %c0_i32 = arith.constant 0 : i32
    %c0_i32_1 = arith.constant 0 : i32
    return %arg0, %c0_i32, %1 : i32, i32, i32
  }
  func.func @transform_2(%arg0: i32, %arg1: i32) -> (i32, i32, i32) {
    %c0_i32 = arith.constant 0 : i32
    %c0_i32_0 = arith.constant 0 : i32
    %c0_i32_1 = arith.constant 0 : i32
    %c0_i32_2 = arith.constant 0 : i32
    return %c0_i32, %c0_i32_0, %c0_i32_1 : i32, i32, i32
  }
  func.func @transform_3(%arg0: i32, %arg1: i32) -> (i32, i32) {
    %c0_i32 = arith.constant 0 : i32
    %c0_i32_0 = arith.constant 0 : i32
    %c0_i32_1 = arith.constant 0 : i32
    return %c0_i32, %c0_i32_0 : i32, i32
  }
  func.func @transform_4(%arg0: i32, %arg1: i32) -> (i32, i32, i32) {
    %c0_i32 = arith.constant 0 : i32
    %c0_i32_0 = arith.constant 0 : i32
    return %arg0, %c0_i32, %arg1 : i32, i32, i32
  }
}

</mosaic_0001>

<llo_original>
// kernel: tpu_custom_call.1
$region0: #{tpu_custom_call.1}
  #allocation0 [shape = 'u32[]', space=smem, size = 0x4, offset = 0x4, fixed_abs, tag = 'smem constant byte address 0x4 - core index']
  #allocation1 [shape = 'u32[144,128]{1,0:T(1,128)}', space=vmem, size = 0x12000, scoped, tag = 'internal scratch']
  %s0 = inlined_call_operand.vmem [shape: bf16[2,16,256], index: 0, kind: input, shape index: {}]
  %s1 = inlined_call_operand.vmem [shape: bf16[2,16,256], index: 1, kind: input, shape index: {}]
  %s2 = inlined_call_operand.vmem [shape: bf16[9,8,4], index: 2, kind: input, shape index: {}]
  %s3 = inlined_call_operand.vmem [shape: f32[8,1], index: 3, kind: input, shape index: {}]
  %s4 = inlined_call_operand.hbm [shape: f32[2,8,128], index: 4, kind: output, shape index: {}]
  %s5 = sld [smem:[#allocation0]]
  $region131: #{tpu_custom_call.1} parent=0
    _
  %s7 = ssub.s32 1, %s5
  %s8 = scalar_select 0, %s7, %s5
  $region1: #{tpu_custom_call.1} parent=0
    #allocation2 [shape = 'u8[8192]{0}', space=vmem, size = 0x2000, scoped, tag = 'input window, operand 0']
    #allocation3 [shape = 'u8[8192]{0}', space=vmem, size = 0x2000, scoped, tag = 'input window, operand 1']
    #allocation4 [shape = 'u8[8192]{0}', space=vmem, size = 0x2000, scoped, tag = 'output window, operand 0']
    #allocation5 [shape = 's32[2]{0}', space=sflag, size = 0x8, scoped, tag = 'scoped memory for tpu_custom_call.1']
    %9 = vsyncpa [#allocation5], 0
    %s10 = scalar_lea.sflag [#allocation5], 1
    %11 = vsyncpa %s10, 0
    loop: start=0, step=1, limit=4
    $region2: #{tpu_custom_call.1} parent=1 // loop_pre_header
      _
    $region3: #{tpu_custom_call.1} parent=1 // loop_header
      %s13 = sphi 0, %s17
      %p14 = scmp.ge.s32.totalorder %s13, 4
      %s20 = sphi 0, %s32
      %s21 = sphi 0, %s28
      %s22 = sphi 0, %s20
      %s23 = sphi 0, %s21
      %s24 = sphi 0, %s22
      %s25 = sphi 0, %s23
      %s37 = sphi 0, %s39
      %s40 = sphi 0, %s37
      %s41 = sphi 0, %s40
      %s57 = sphi 0, %s41
      %s67 = sphi 0, %s69
      %s70 = sphi 0, %s67
      %s71 = sphi 0, %s70
      %s87 = sphi 0, %s71
      %s91 = sphi 0, %s91
      %s93 = sphi 0, %s91
      %s94 = sphi 0, %s93
      %s108 = sphi 0, %s94
      %s112 = sphi 0, %s112
      %s114 = sphi 0, %s112
      %s115 = sphi 0, %s114
      %s129 = sphi 0, %s115
      %s137 = sphi 0, %s139
      %s140 = sphi 0, %s137
      %s141 = sphi 0, %s140
      %s157 = sphi 0, %s141
    $region4: #{tpu_custom_call.1} parent=1 // loop_header_branch
      %16 = sbr.rel (%p14) target = $region8
    $region5: #{tpu_custom_call.1} parent=1 // loop_body
      %s18 = ssub.s32 %s13, 1
      %s19 = ssub.s32 %s13, 2
      %s26 = sadd.s32 1, %s21
      %p27 = scmp.ge.s32.totalorder %s26, 1
      %s28 = scalar_select %p27, 0, %s26
      %s29 = sadd.s32 1, %s20
      %s30 = scalar_select %p27, %s29, %s20
      %p31 = scmp.ge.s32.totalorder %s30, 2
      %s32 = scalar_select %p31, 0, %s30
      %s33 = ssub.s32 %s20, %s32
      %s34 = ssub.s32 %s21, %s28
      %s35 = sor.u32 %s33, %s34
      %p36 = scmp.eq.s32.totalorder %s35, 0
      %s38 = sadd.s32 %s37, 1
      %s39 = scalar_select %p36, %s37, %s38
      %p42 = pneg %p36
      %p43 = scmp.eq.s32.totalorder %s13, 1
      %p44 = por %p42, %p43
      %p45 = scmp.ne.s32.totalorder %s37, %s40
      %p46 = scmp.eq.s32.totalorder %s13, 0
      %p47 = por %p45, %p46
      %p48 = scmp.ne.s32.totalorder %s37, %s40
      %p49 = scmp.eq.s32.totalorder %s18, 1
      %p50 = por %p48, %p49
      %p51 = scmp.ne.s32.totalorder %s40, %s41
      %p52 = scmp.eq.s32.totalorder %s18, 0
      %p53 = por %p51, %p52
      %p54 = scmp.ne.s32.totalorder %s40, %s41
      %p55 = scmp.eq.s32.totalorder %s19, 1
      %p56 = por %p54, %p55
      %p58 = scmp.ne.s32.totalorder %s41, %s57
      %p59 = scmp.eq.s32.totalorder %s19, 0
      %p60 = por %p58, %p59
      %s61 = sadd.s32 %s21, 1
      %s62 = sadd.s32 %s28, 1
      %s63 = ssub.s32 %s20, %s32
      %s64 = ssub.s32 %s61, %s62
      %s65 = sor.u32 %s63, %s64
      %p66 = scmp.eq.s32.totalorder %s65, 0
      %s68 = sadd.s32 %s67, 1
      %s69 = scalar_select %p66, %s67, %s68
      %p72 = pneg %p66
      %p73 = scmp.eq.s32.totalorder %s13, 1
      %p74 = por %p72, %p73
      %p75 = scmp.ne.s32.totalorder %s67, %s70
      %p76 = scmp.eq.s32.totalorder %s13, 0
      %p77 = por %p75, %p76
      %p78 = scmp.ne.s32.totalorder %s67, %s70
      %p79 = scmp.eq.s32.totalorder %s18, 1
      %p80 = por %p78, %p79
      %p81 = scmp.ne.s32.totalorder %s70, %s71
      %p82 = scmp.eq.s32.totalorder %s18, 0
      %p83 = por %p81, %p82
      %p84 = scmp.ne.s32.totalorder %s70, %s71
      %p85 = scmp.eq.s32.totalorder %s19, 1
      %p86 = por %p84, %p85
      %p88 = scmp.ne.s32.totalorder %s71, %s87
      %p89 = scmp.eq.s32.totalorder %s19, 0
      %p90 = por %p88, %p89
      %s92 = sadd.s32 %s91, 1
      %p95 = scmp.eq.s32.totalorder %s13, 1
      %p96 = scmp.ne.s32.totalorder %s91, %s93
      %p97 = scmp.eq.s32.totalorder %s13, 0
      %p98 = por %p96, %p97
      %p99 = scmp.ne.s32.totalorder %s91, %s93
      %p100 = scmp.eq.s32.totalorder %s18, 1
      %p101 = por %p99, %p100
      %p102 = scmp.ne.s32.totalorder %s93, %s94
      %p103 = scmp.eq.s32.totalorder %s18, 0
      %p104 = por %p102, %p103
      %p105 = scmp.ne.s32.totalorder %s93, %s94
      %p106 = scmp.eq.s32.totalorder %s19, 1
      %p107 = por %p105, %p106
      %p109 = scmp.ne.s32.totalorder %s94, %s108
      %p110 = scmp.eq.s32.totalorder %s19, 0
      %p111 = por %p109, %p110
      %s113 = sadd.s32 %s112, 1
      %p116 = scmp.eq.s32.totalorder %s13, 1
      %p117 = scmp.ne.s32.totalorder %s112, %s114
      %p118 = scmp.eq.s32.totalorder %s13, 0
      %p119 = por %p117, %p118
      %p120 = scmp.ne.s32.totalorder %s112, %s114
      %p121 = scmp.eq.s32.totalorder %s18, 1
      %p122 = por %p120, %p121
      %p123 = scmp.ne.s32.totalorder %s114, %s115
      %p124 = scmp.eq.s32.totalorder %s18, 0
      %p125 = por %p123, %p124
      %p126 = scmp.ne.s32.totalorder %s114, %s115
      %p127 = scmp.eq.s32.totalorder %s19, 1
      %p128 = por %p126, %p127
      %p130 = scmp.ne.s32.totalorder %s115, %s129
      %p131 = scmp.eq.s32.totalorder %s19, 0
      %p132 = por %p130, %p131
      %s133 = ssub.s32 %s20, %s32
      %s134 = ssub.s32 %s21, %s28
      %s135 = sor.u32 %s133, %s134
      %p136 = scmp.eq.s32.totalorder %s135, 0
      %s138 = sadd.s32 %s137, 1
      %s139 = scalar_select %p136, %s137, %s138
      %p142 = pneg %p136
      %p143 = scmp.eq.s32.totalorder %s13, 1
      %p144 = por %p142, %p143
      %p145 = scmp.ne.s32.totalorder %s137, %s140
      %p146 = scmp.eq.s32.totalorder %s13, 0
      %p147 = por %p145, %p146
      %p148 = scmp.ne.s32.totalorder %s137, %s140
      %p149 = scmp.eq.s32.totalorder %s18, 1
      %p150 = por %p148, %p149
      %p151 = scmp.ne.s32.totalorder %s140, %s141
      %p152 = scmp.eq.s32.totalorder %s18, 0
      %p153 = por %p151, %p152
      %p154 = scmp.ne.s32.totalorder %s140, %s141
      %p155 = scmp.eq.s32.totalorder %s19, 1
      %p156 = por %p154, %p155
      %p158 = scmp.ne.s32.totalorder %s141, %s157
      %p159 = scmp.eq.s32.totalorder %s19, 0
      %p160 = por %p158, %p159
      %p161 = scmp.le.s32.totalorder 1, %s13
      %p162 = scmp.lt.s32.totalorder %s13, 3
      %p163 = pnand %p161, %p162
      %p164 = pneg %p163
      // Predicated region
      $region9: #{tpu_custom_call.1} parent=5 // pred_check
        _
      $region10: #{tpu_custom_call.1} parent=5 // pred_check_branch
        %166 = sbr.rel (%p163) target = $region12
      $region11: #{tpu_custom_call.1} parent=5 // pred_region
        %s167 = ssub.s32 %s13, 1
        // Predicated region
        $region13: #{tpu_custom_call.1} parent=11 // pred_check
          %p168 = pneg %p104
        $region14: #{tpu_custom_call.1} parent=11 // pred_check_branch
          %170 = sbr.rel (%p168) target = $region16
        $region15: #{tpu_custom_call.1} parent=11 // pred_region
          _
        $region16: #{tpu_custom_call.1} parent=11 // pred_fallthru
          _
        // Predicated region
        $region17: #{tpu_custom_call.1} parent=11 // pred_check
          %p171 = pneg %p125
        $region18: #{tpu_custom_call.1} parent=11 // pred_check_branch
          %173 = sbr.rel (%p171) target = $region20
        $region19: #{tpu_custom_call.1} parent=11 // pred_region
          _
        $region20: #{tpu_custom_call.1} parent=11 // pred_fallthru
          _
      $region12: #{tpu_custom_call.1} parent=5 // pred_fallthru
        _
      %p174 = scmp.lt.s32.totalorder %s13, 2
      // Predicated region
      $region21: #{tpu_custom_call.1} parent=5 // pred_check
        %p175 = pneg %p174
      $region22: #{tpu_custom_call.1} parent=5 // pred_check_branch
        %177 = sbr.rel (%p175) target = $region24
      $region23: #{tpu_custom_call.1} parent=5 // pred_region
        // Predicated region
        $region25: #{tpu_custom_call.1} parent=23 // pred_check
          %p178 = pneg %p47
        $region26: #{tpu_custom_call.1} parent=23 // pred_check_branch
          %180 = sbr.rel (%p178) target = $region28
        $region27: #{tpu_custom_call.1} parent=23 // pred_region
          %s181 = sand.u32 %s37, 1
          %s182 = sand.u32 %s37, 1
          %s183 = smul.addr %s182, 8
          %s184 = scalar_lea.vmem [#allocation2], %s183
          %s185 = smul.addr %s20, 4
          %s186 = sadd.s32 %s21, %s185
          %s187 = smul.addr %s186, 4
          %s188 = scalar_lea.vmem %s0, %s187
          // Predicated region
          $region29: #{tpu_custom_call.1} parent=27 // pred_check
            _
          $region30: #{tpu_custom_call.1} parent=27 // pred_check_branch
            %190 = sbr.rel (0) target = $region32
          $region31: #{tpu_custom_call.1} parent=27 // pred_region
            // Predicated region
            $region33: #{tpu_custom_call.1} parent=31 // pred_check
              _
            $region34: #{tpu_custom_call.1} parent=31 // pred_check_branch
              %192 = sbr.rel target = $region36
            $region35: #{tpu_custom_call.1} parent=31 // pred_region
              // Predicated region
              $region48: #{tpu_custom_call.1} parent=35 // pred_check
                _
              $region49: #{tpu_custom_call.1} parent=35 // pred_check_branch
                %209 = sbr.rel (0) target = $region51
              $region50: #{tpu_custom_call.1} parent=35 // pred_region
                loop: start=0, step=1, limit=1
                $region52: #{tpu_custom_call.1} parent=50 // loop_pre_header
                  _
                $region53: #{tpu_custom_call.1} parent=50 // loop_header
                  %s211 = sphi 0, %s215
                  %p212 = scmp.ge.s32.totalorder %s211, 1
                  %s216 = sphi %s188, %s188
                  %s217 = sphi %s184, %s184
                $region54: #{tpu_custom_call.1} parent=50 // loop_header_branch
                  %214 = sbr.rel (%p212) target = $region58
                $region55: #{tpu_custom_call.1} parent=50 // loop_body
                  _
                $region56: #{tpu_custom_call.1} parent=50 // loop_footer
                  %s215 = sadd.s32 1, %s211
                $region57: #{tpu_custom_call.1} parent=50 // loop_footer_branch
                  %210 = sbr.rel target = $region53
                $region58: #{tpu_custom_call.1} parent=50 // loop_exit
                  _
                loop: start=0, step=1, limit=1
                $region59: #{tpu_custom_call.1} parent=50 // loop_pre_header
                  _
                $region60: #{tpu_custom_call.1} parent=50 // loop_header
                  %s220 = sphi 0, %s224
                  %p221 = scmp.ge.s32.totalorder %s220, 1
                  %s225 = sphi %s188, %s188
                  %s226 = sphi %s184, %s184
                $region61: #{tpu_custom_call.1} parent=50 // loop_header_branch
                  %223 = sbr.rel (%p221) target = $region65
                $region62: #{tpu_custom_call.1} parent=50 // loop_body
                  %v227 = vld [vmem:[%s225] sm:$0xf]
                  %228 = vst [vmem:[%s226] sm:$0xf] %v227
                  %v229 = vld [vmem:[%s225 + $0x8] sm:$0xf]
                  %230 = vst [vmem:[%s226 + $0x4] sm:$0xf] %v229
                $region63: #{tpu_custom_call.1} parent=50 // loop_footer
                  %s224 = sadd.s32 1, %s220
                $region64: #{tpu_custom_call.1} parent=50 // loop_footer_branch
                  %219 = sbr.rel target = $region60
                $region65: #{tpu_custom_call.1} parent=50 // loop_exit
                  _
              $region51: #{tpu_custom_call.1} parent=35 // pred_fallthru
                _
            $region36: #{tpu_custom_call.1} parent=31 // pred_fallthru
              _
            // Predicated region
            $region37: #{tpu_custom_call.1} parent=31 // pred_check
              _
            $region38: #{tpu_custom_call.1} parent=31 // pred_check_branch
              %194 = sbr.rel (0) target = $region40
            $region39: #{tpu_custom_call.1} parent=31 // pred_region
              loop: start=0, step=1, limit=1
              $region41: #{tpu_custom_call.1} parent=39 // loop_pre_header
                _
              $region42: #{tpu_custom_call.1} parent=39 // loop_header
                %s197 = sphi 0, %s201
                %p198 = scmp.ge.s32.totalorder %s197, 1
                %s202 = sphi %s188, %s188
                %s203 = sphi %s184, %s184
              $region43: #{tpu_custom_call.1} parent=39 // loop_header_branch
                %200 = sbr.rel (%p198) target = $region47
              $region44: #{tpu_custom_call.1} parent=39 // loop_body
                %v204 = vld [vmem:[%s202] sm:$0xf]
                %205 = vst [vmem:[%s203] sm:$0xf] %v204
                %v206 = vld [vmem:[%s202 + $0x8] sm:$0xf]
                %207 = vst [vmem:[%s203 + $0x4] sm:$0xf] %v206
              $region45: #{tpu_custom_call.1} parent=39 // loop_footer
                %s201 = sadd.s32 1, %s197
              $region46: #{tpu_custom_call.1} parent=39 // loop_footer_branch
                %196 = sbr.rel target = $region42
              $region47: #{tpu_custom_call.1} parent=39 // loop_exit
                _
            $region40: #{tpu_custom_call.1} parent=31 // pred_fallthru
              _
          $region32: #{tpu_custom_call.1} parent=27 // pred_fallthru
            _
          %231 = vnop
        $region28: #{tpu_custom_call.1} parent=23 // pred_fallthru
          _
        // Predicated region
        $region66: #{tpu_custom_call.1} parent=23 // pred_check
          %p232 = pneg %p77
        $region67: #{tpu_custom_call.1} parent=23 // pred_check_branch
          %234 = sbr.rel (%p232) target = $region69
        $region68: #{tpu_custom_call.1} parent=23 // pred_region
          %s235 = sand.u32 %s67, 1
          %s236 = sand.u32 %s67, 1
          %s237 = smul.addr %s236, 8
          %s238 = scalar_lea.vmem [#allocation3], %s237
          %s239 = sadd.s32 %s21, 1
          %s240 = smul.addr %s20, 4
          %s241 = sadd.s32 %s239, %s240
          %s242 = smul.addr %s241, 4
          %s243 = scalar_lea.vmem %s1, %s242
          // Predicated region
          $region70: #{tpu_custom_call.1} parent=68 // pred_check
            _
          $region71: #{tpu_custom_call.1} parent=68 // pred_check_branch
            %245 = sbr.rel (0) target = $region73
          $region72: #{tpu_custom_call.1} parent=68 // pred_region
            // Predicated region
            $region74: #{tpu_custom_call.1} parent=72 // pred_check
              _
            $region75: #{tpu_custom_call.1} parent=72 // pred_check_branch
              %247 = sbr.rel target = $region77
            $region76: #{tpu_custom_call.1} parent=72 // pred_region
              // Predicated region
              $region89: #{tpu_custom_call.1} parent=76 // pred_check
                _
              $region90: #{tpu_custom_call.1} parent=76 // pred_check_branch
                %264 = sbr.rel (0) target = $region92
              $region91: #{tpu_custom_call.1} parent=76 // pred_region
                loop: start=0, step=1, limit=1
                $region93: #{tpu_custom_call.1} parent=91 // loop_pre_header
                  _
                $region94: #{tpu_custom_call.1} parent=91 // loop_header
                  %s266 = sphi 0, %s270
                  %p267 = scmp.ge.s32.totalorder %s266, 1
                  %s271 = sphi %s243, %s243
                  %s272 = sphi %s238, %s238
                $region95: #{tpu_custom_call.1} parent=91 // loop_header_branch
                  %269 = sbr.rel (%p267) target = $region99
                $region96: #{tpu_custom_call.1} parent=91 // loop_body
                  _
                $region97: #{tpu_custom_call.1} parent=91 // loop_footer
                  %s270 = sadd.s32 1, %s266
                $region98: #{tpu_custom_call.1} parent=91 // loop_footer_branch
                  %265 = sbr.rel target = $region94
                $region99: #{tpu_custom_call.1} parent=91 // loop_exit
                  _
                loop: start=0, step=1, limit=1
                $region100: #{tpu_custom_call.1} parent=91 // loop_pre_header
                  _
                $region101: #{tpu_custom_call.1} parent=91 // loop_header
                  %s275 = sphi 0, %s279
                  %p276 = scmp.ge.s32.totalorder %s275, 1
                  %s280 = sphi %s243, %s243
                  %s281 = sphi %s238, %s238
                $region102: #{tpu_custom_call.1} parent=91 // loop_header_branch
                  %278 = sbr.rel (%p276) target = $region106
                $region103: #{tpu_custom_call.1} parent=91 // loop_body
                  %v282 = vld [vmem:[%s280] sm:$0xf]
                  %283 = vst [vmem:[%s281] sm:$0xf] %v282
                  %v284 = vld [vmem:[%s280 + $0x8] sm:$0xf]
                  %285 = vst [vmem:[%s281 + $0x4] sm:$0xf] %v284
                $region104: #{tpu_custom_call.1} parent=91 // loop_footer
                  %s279 = sadd.s32 1, %s275
                $region105: #{tpu_custom_call.1} parent=91 // loop_footer_branch
                  %274 = sbr.rel target = $region101
                $region106: #{tpu_custom_call.1} parent=91 // loop_exit
                  _
              $region92: #{tpu_custom_call.1} parent=76 // pred_fallthru
                _
            $region77: #{tpu_custom_call.1} parent=72 // pred_fallthru
              _
            // Predicated region
            $region78: #{tpu_custom_call.1} parent=72 // pred_check
              _
            $region79: #{tpu_custom_call.1} parent=72 // pred_check_branch
              %249 = sbr.rel (0) target = $region81
            $region80: #{tpu_custom_call.1} parent=72 // pred_region
              loop: start=0, step=1, limit=1
              $region82: #{tpu_custom_call.1} parent=80 // loop_pre_header
                _
              $region83: #{tpu_custom_call.1} parent=80 // loop_header
                %s252 = sphi 0, %s256
                %p253 = scmp.ge.s32.totalorder %s252, 1
                %s257 = sphi %s243, %s243
                %s258 = sphi %s238, %s238
              $region84: #{tpu_custom_call.1} parent=80 // loop_header_branch
                %255 = sbr.rel (%p253) target = $region88
              $region85: #{tpu_custom_call.1} parent=80 // loop_body
                %v259 = vld [vmem:[%s257] sm:$0xf]
                %260 = vst [vmem:[%s258] sm:$0xf] %v259
                %v261 = vld [vmem:[%s257 + $0x8] sm:$0xf]
                %262 = vst [vmem:[%s258 + $0x4] sm:$0xf] %v261
              $region86: #{tpu_custom_call.1} parent=80 // loop_footer
                %s256 = sadd.s32 1, %s252
              $region87: #{tpu_custom_call.1} parent=80 // loop_footer_branch
                %251 = sbr.rel target = $region83
              $region88: #{tpu_custom_call.1} parent=80 // loop_exit
                _
            $region81: #{tpu_custom_call.1} parent=72 // pred_fallthru
              _
          $region73: #{tpu_custom_call.1} parent=68 // pred_fallthru
            _
          %286 = vnop
        $region69: #{tpu_custom_call.1} parent=23 // pred_fallthru
          _
      $region24: #{tpu_custom_call.1} parent=5 // pred_fallthru
        _
      %p287 = scmp.le.s32.totalorder 1, %s13
      %p288 = scmp.lt.s32.totalorder %s13, 3
      %p289 = pnand %p287, %p288
      %p290 = pneg %p289
      // Predicated region
      $region107: #{tpu_custom_call.1} parent=5 // pred_check
        _
      $region108: #{tpu_custom_call.1} parent=5 // pred_check_branch
        %292 = sbr.rel (%p289) target = $region110
      $region109: #{tpu_custom_call.1} parent=5 // pred_region
        %s293 = ssub.s32 %s13, 1
        %s294 = sand.u32 %s40, 1
        %s295 = sand.u32 %s40, 1
        %s296 = smul.addr %s295, 8
        %s297 = scalar_lea.vmem [#allocation2], %s296
        // Predicated region
        $region111: #{tpu_custom_call.1} parent=109 // pred_check
          %p298 = pneg %p53
        $region112: #{tpu_custom_call.1} parent=109 // pred_check_branch
          %300 = sbr.rel (%p298) target = $region114
        $region113: #{tpu_custom_call.1} parent=109 // pred_region
          _
        $region114: #{tpu_custom_call.1} parent=109 // pred_fallthru
          _
        %s301 = sand.u32 %s70, 1
        %s302 = sand.u32 %s70, 1
        %s303 = smul.addr %s302, 8
        %s304 = scalar_lea.vmem [#allocation3], %s303
        // Predicated region
        $region115: #{tpu_custom_call.1} parent=109 // pred_check
          %p305 = pneg %p83
        $region116: #{tpu_custom_call.1} parent=109 // pred_check_branch
          %307 = sbr.rel (%p305) target = $region118
        $region117: #{tpu_custom_call.1} parent=109 // pred_region
          _
        $region118: #{tpu_custom_call.1} parent=109 // pred_fallthru
          _
        %s308 = sand.u32 %s40, 1
        %s309 = sand.u32 %s40, 1
        %s310 = smul.addr %s309, 8
        %s311 = scalar_lea.vmem [#allocation2], %s310
        %p312 = pneg %p53
        %p313 = pneg %p50
        %s314 = sand.u32 %s70, 1
        %s315 = sand.u32 %s70, 1
        %s316 = smul.addr %s315, 8
        %s317 = scalar_lea.vmem [#allocation3], %s316
        %p318 = pneg %p83
        %p319 = pneg %p80
        %p320 = pneg %p104
        %p321 = pneg %p101
        %p322 = pneg %p125
        %p323 = pneg %p122
        %p324 = pneg %p153
        %p325 = pneg %p150
        %s326 = sand.u32 %s140, 1
        %s327 = scalar_lea.sflag [#allocation5], %s326
        %s328 = sand.u32 %s140, 1
        %s329 = smul.addr %s328, 8
        %s330 = scalar_lea.vmem [#allocation4], %s329
        %s331 = sadd.s32 %s23, 1
        %v333 = vld [vmem:[%s297] sm:$0x3]
        %v334 = vld [vmem:[%s2] sm:$0xf]
        %v335 = vld [vmem:[%s297] sm:$0xc]
        %s336 = scalar_lea.vmem %s2, 4
        %v337 = vld [vmem:[%s336] sm:$0xf]
        %v339 = vunpack.c.l.b16 %v335
        %v340 = vpack.c.b16 %v339, %v339
        %v341 = vrot.slane %v340, 2
        %vm342 = vcmask 31744
        %v344 = vsel %vm342, %v337, 0
        %vm346 = vcmask 1041408
        %v348 = vsel %vm346, %v341, 0
        %350 = vmatprep.subr.bf16.mxu0 0
        %351 = vmatpush1.bf16.msra.mxu0 %v348
        %352 = vmatprep.subr.bf16.mxu0 0
        %353 = vmatpush1.bf16.msra.mxu0 0
        %354 = vmatprep.subr.bf16.mxu0 0
        %355 = vmatpush1.bf16.msra.mxu0 0
        %356 = vmatprep.subr.bf16.mxu0 0
        %357 = vmatpush1.bf16.msra.mxu0 0
        %358 = vmatprep.subr.bf16.mxu0 0
        %359 = vmatpush1.bf16.msra.mxu0 0
        %360 = vmatprep.subr.bf16.mxu0 0
        %361 = vmatpush1.bf16.msra.mxu0 0
        %362 = vmatprep.subr.bf16.mxu0 0
        %363 = vmatpush1.bf16.msra.mxu0 0
        %364 = vmatprep.subr.bf16.mxu0 0
        %365 = vmatpush1.bf16.msra.mxu0 0
        %366 = vmatprep.subr.bf16.mxu0 0
        %367 = vmatpush1.bf16.msra.mxu0 0
        %368 = vmatprep.subr.bf16.mxu0 0
        %369 = vmatpush1.bf16.msra.mxu0 0
        %370 = vmatprep.subr.bf16.mxu0 0
        %371 = vmatpush1.bf16.msra.mxu0 0
        %372 = vmatprep.subr.bf16.mxu0 0
        %373 = vmatpush1.bf16.msra.mxu0 0
        %374 = vmatprep.subr.bf16.mxu0 0
        %375 = vmatpush1.bf16.msra.mxu0 0
        %376 = vmatprep.subr.bf16.mxu0 0
        %377 = vmatpush1.bf16.msra.mxu0 0
        %378 = vmatprep.subr.bf16.mxu0 0
        %379 = vmatpush1.bf16.msra.mxu0 0
        %380 = vmatprep.subr.bf16.mxu0 0
        %381 = vmatpush1.bf16.msra.mxu0 0
        %382 = vmatprep.mubr.bf16.mxu0 0
        %383 = vmatmul.mubr.bf16.gmra.mrb[0].mxu0 %v344
        %v384 = vpop.f32.mrb[0].mxu0
        %v385 = vadd.f32 0.0, %v384
        %v386 = vpop.f32.mrb[0].mxu0
        %v387 = vpop.f32.mrb[0].mxu0
        %v388 = vpop.f32.mrb[0].mxu0
        %389 = vdwg.mxu0
        %v391 = vsel %vm342, %v334, 0
        %v394 = vsel %vm346, %v333, 0
        %396 = vmatprep.subr.bf16.mxu0 0
        %397 = vmatpush1.bf16.msra.mxu0 %v394
        %398 = vmatprep.subr.bf16.mxu0 0
        %399 = vmatpush1.bf16.msra.mxu0 0
        %400 = vmatprep.subr.bf16.mxu0 0
        %401 = vmatpush1.bf16.msra.mxu0 0
        %402 = vmatprep.subr.bf16.mxu0 0
        %403 = vmatpush1.bf16.msra.mxu0 0
        %404 = vmatprep.subr.bf16.mxu0 0
        %405 = vmatpush1.bf16.msra.mxu0 0
        %406 = vmatprep.subr.bf16.mxu0 0
        %407 = vmatpush1.bf16.msra.mxu0 0
        %408 = vmatprep.subr.bf16.mxu0 0
        %409 = vmatpush1.bf16.msra.mxu0 0
        %410 = vmatprep.subr.bf16.mxu0 0
        %411 = vmatpush1.bf16.msra.mxu0 0
        %412 = vmatprep.subr.bf16.mxu0 0
        %413 = vmatpush1.bf16.msra.mxu0 0
        %414 = vmatprep.subr.bf16.mxu0 0
        %415 = vmatpush1.bf16.msra.mxu0 0
        %416 = vmatprep.subr.bf16.mxu0 0
        %417 = vmatpush1.bf16.msra.mxu0 0
        %418 = vmatprep.subr.bf16.mxu0 0
        %419 = vmatpush1.bf16.msra.mxu0 0
        %420 = vmatprep.subr.bf16.mxu0 0
        %421 = vmatpush1.bf16.msra.mxu0 0
        %422 = vmatprep.subr.bf16.mxu0 0
        %423 = vmatpush1.bf16.msra.mxu0 0
        %424 = vmatprep.subr.bf16.mxu0 0
        %425 = vmatpush1.bf16.msra.mxu0 0
        %426 = vmatprep.subr.bf16.mxu0 0
        %427 = vmatpush1.bf16.msra.mxu0 0
        %428 = vmatprep.mubr.bf16.mxu0 0
        %429 = vmatmul.mubr.bf16.gmra.mrb[0].mxu0 %v391
        %v430 = vpop.f32.mrb[0].mxu0
        %v431 = vadd.f32 %v385, %v430
        %v432 = vpop.f32.mrb[0].mxu0
        %v433 = vpop.f32.mrb[0].mxu0
        %v434 = vpop.f32.mrb[0].mxu0
        %435 = vdwg.mxu0
        %v436 = vld [vmem:[%s304] sm:$0x3]
        %v438 = vunpack.c.l.b16 %v333
        %v439 = vpack.c.b16 %v438, %v438
        %440 = vrot.lane.b32.xlu0 %v439, 127
        %v441 = vpop.permute.xlu0 %440
        %v443 = vunpack.c.l.b16 %v436
        %v444 = vpack.c.b16 %v443, %v443
        %445 = vrot.lane.b32.xlu0 %v444, 127
        %v446 = vpop.permute.xlu0 %445
        %vm447 = vcmask 1039360
        %v450 = vsel %vm447, %v441, %v446
        %s451 = scalar_lea.vmem %s2, 8
        %v452 = vld [vmem:[%s451] sm:$0xf]
        %v454 = vsel %vm342, %v452, 0
        %v456 = vsel %vm346, %v450, 0
        %458 = vmatprep.subr.bf16.mxu0 0
        %459 = vmatpush1.bf16.msra.mxu0 %v456
        %460 = vmatprep.subr.bf16.mxu0 0
        %461 = vmatpush1.bf16.msra.mxu0 0
        %462 = vmatprep.subr.bf16.mxu0 0
        %463 = vmatpush1.bf16.msra.mxu0 0
        %464 = vmatprep.subr.bf16.mxu0 0
        %465 = vmatpush1.bf16.msra.mxu0 0
        %466 = vmatprep.subr.bf16.mxu0 0
        %467 = vmatpush1.bf16.msra.mxu0 0
        %468 = vmatprep.subr.bf16.mxu0 0
        %469 = vmatpush1.bf16.msra.mxu0 0
        %470 = vmatprep.subr.bf16.mxu0 0
        %471 = vmatpush1.bf16.msra.mxu0 0
        %472 = vmatprep.subr.bf16.mxu0 0
        %473 = vmatpush1.bf16.msra.mxu0 0
        %474 = vmatprep.subr.bf16.mxu0 0
        %475 = vmatpush1.bf16.msra.mxu0 0
        %476 = vmatprep.subr.bf16.mxu0 0
        %477 = vmatpush1.bf16.msra.mxu0 0
        %478 = vmatprep.subr.bf16.mxu0 0
        %479 = vmatpush1.bf16.msra.mxu0 0
        %480 = vmatprep.subr.bf16.mxu0 0
        %481 = vmatpush1.bf16.msra.mxu0 0
        %482 = vmatprep.subr.bf16.mxu0 0
        %483 = vmatpush1.bf16.msra.mxu0 0
        %484 = vmatprep.subr.bf16.mxu0 0
        %485 = vmatpush1.bf16.msra.mxu0 0
        %486 = vmatprep.subr.bf16.mxu0 0
        %487 = vmatpush1.bf16.msra.mxu0 0
        %488 = vmatprep.subr.bf16.mxu0 0
        %489 = vmatpush1.bf16.msra.mxu0 0
        %490 = vmatprep.mubr.bf16.mxu0 0
        %491 = vmatmul.mubr.bf16.gmra.mrb[0].mxu0 %v454
        %v492 = vpop.f32.mrb[0].mxu0
        %v493 = vadd.f32 0.0, %v492
        %v494 = vpop.f32.mrb[0].mxu0
        %v495 = vpop.f32.mrb[0].mxu0
        %v496 = vpop.f32.mrb[0].mxu0
        %497 = vdwg.mxu0
        %v498 = vadd.f32 %v431, %v493
        %v499 = vld [vmem:[%s297 + $0x4] sm:$0x3]
        %s500 = scalar_lea.vmem %s2, 12
        %v501 = vld [vmem:[%s500] sm:$0xf]
        %v503 = vsel %vm342, %v501, 0
        %v506 = vsel %vm346, %v499, 0
        %508 = vmatprep.subr.bf16.mxu0 0
        %509 = vmatpush1.bf16.msra.mxu0 %v506
        %510 = vmatprep.subr.bf16.mxu0 0
        %511 = vmatpush1.bf16.msra.mxu0 0
        %512 = vmatprep.subr.bf16.mxu0 0
        %513 = vmatpush1.bf16.msra.mxu0 0
        %514 = vmatprep.subr.bf16.mxu0 0
        %515 = vmatpush1.bf16.msra.mxu0 0
        %516 = vmatprep.subr.bf16.mxu0 0
        %517 = vmatpush1.bf16.msra.mxu0 0
        %518 = vmatprep.subr.bf16.mxu0 0
        %519 = vmatpush1.bf16.msra.mxu0 0
        %520 = vmatprep.subr.bf16.mxu0 0
        %521 = vmatpush1.bf16.msra.mxu0 0
        %522 = vmatprep.subr.bf16.mxu0 0
        %523 = vmatpush1.bf16.msra.mxu0 0
        %524 = vmatprep.subr.bf16.mxu0 0
        %525 = vmatpush1.bf16.msra.mxu0 0
        %526 = vmatprep.subr.bf16.mxu0 0
        %527 = vmatpush1.bf16.msra.mxu0 0
        %528 = vmatprep.subr.bf16.mxu0 0
        %529 = vmatpush1.bf16.msra.mxu0 0
        %530 = vmatprep.subr.bf16.mxu0 0
        %531 = vmatpush1.bf16.msra.mxu0 0
        %532 = vmatprep.subr.bf16.mxu0 0
        %533 = vmatpush1.bf16.msra.mxu0 0
        %534 = vmatprep.subr.bf16.mxu0 0
        %535 = vmatpush1.bf16.msra.mxu0 0
        %536 = vmatprep.subr.bf16.mxu0 0
        %537 = vmatpush1.bf16.msra.mxu0 0
        %538 = vmatprep.subr.bf16.mxu0 0
        %539 = vmatpush1.bf16.msra.mxu0 0
        %540 = vmatprep.mubr.bf16.mxu0 0
        %541 = vmatmul.mubr.bf16.gmra.mrb[0].mxu0 %v503
        %v542 = vpop.f32.mrb[0].mxu0
        %v543 = vadd.f32 0.0, %v542
        %v544 = vpop.f32.mrb[0].mxu0
        %v545 = vpop.f32.mrb[0].mxu0
        %v546 = vpop.f32.mrb[0].mxu0
        %547 = vdwg.mxu0
        %v548 = vadd.f32 %v498, %v543
        %v549 = vld [vmem:[%s297 + $0x4] sm:$0xc]
        %s550 = scalar_lea.vmem %s2, 16
        %v551 = vld [vmem:[%s550] sm:$0xf]
        %v553 = vunpack.c.l.b16 %v549
        %v554 = vpack.c.b16 %v553, %v553
        %v555 = vrot.slane %v554, 2
        %v557 = vsel %vm342, %v551, 0
        %v560 = vsel %vm346, %v555, 0
        %562 = vmatprep.subr.bf16.mxu0 0
        %563 = vmatpush1.bf16.msra.mxu0 %v560
        %564 = vmatprep.subr.bf16.mxu0 0
        %565 = vmatpush1.bf16.msra.mxu0 0
        %566 = vmatprep.subr.bf16.mxu0 0
        %567 = vmatpush1.bf16.msra.mxu0 0
        %568 = vmatprep.subr.bf16.mxu0 0
        %569 = vmatpush1.bf16.msra.mxu0 0
        %570 = vmatprep.subr.bf16.mxu0 0
        %571 = vmatpush1.bf16.msra.mxu0 0
        %572 = vmatprep.subr.bf16.mxu0 0
        %573 = vmatpush1.bf16.msra.mxu0 0
        %574 = vmatprep.subr.bf16.mxu0 0
        %575 = vmatpush1.bf16.msra.mxu0 0
        %576 = vmatprep.subr.bf16.mxu0 0
        %577 = vmatpush1.bf16.msra.mxu0 0
        %578 = vmatprep.subr.bf16.mxu0 0
        %579 = vmatpush1.bf16.msra.mxu0 0
        %580 = vmatprep.subr.bf16.mxu0 0
        %581 = vmatpush1.bf16.msra.mxu0 0
        %582 = vmatprep.subr.bf16.mxu0 0
        %583 = vmatpush1.bf16.msra.mxu0 0
        %584 = vmatprep.subr.bf16.mxu0 0
        %585 = vmatpush1.bf16.msra.mxu0 0
        %586 = vmatprep.subr.bf16.mxu0 0
        %587 = vmatpush1.bf16.msra.mxu0 0
        %588 = vmatprep.subr.bf16.mxu0 0
        %589 = vmatpush1.bf16.msra.mxu0 0
        %590 = vmatprep.subr.bf16.mxu0 0
        %591 = vmatpush1.bf16.msra.mxu0 0
        %592 = vmatprep.subr.bf16.mxu0 0
        %593 = vmatpush1.bf16.msra.mxu0 0
        %594 = vmatprep.mubr.bf16.mxu0 0
        %595 = vmatmul.mubr.bf16.gmra.mrb[0].mxu0 %v557
        %v596 = vpop.f32.mrb[0].mxu0
        %v597 = vadd.f32 0.0, %v596
        %v598 = vpop.f32.mrb[0].mxu0
        %v599 = vpop.f32.mrb[0].mxu0
        %v600 = vpop.f32.mrb[0].mxu0
        %601 = vdwg.mxu0
        %v602 = vadd.f32 %v548, %v597
        %v603 = vld [vmem:[%s304 + $0x4] sm:$0x3]
        %v605 = vunpack.c.l.b16 %v499
        %v606 = vpack.c.b16 %v605, %v605
        %607 = vrot.lane.b32.xlu0 %v606, 127
        %v608 = vpop.permute.xlu0 %607
        %v610 = vunpack.c.l.b16 %v603
        %v611 = vpack.c.b16 %v610, %v610
        %612 = vrot.lane.b32.xlu0 %v611, 127
        %v613 = vpop.permute.xlu0 %612
        %v616 = vsel %vm447, %v608, %v613
        %s617 = scalar_lea.vmem %s2, 20
        %v618 = vld [vmem:[%s617] sm:$0xf]
        %v620 = vsel %vm342, %v618, 0
        %v622 = vsel %vm346, %v616, 0
        %624 = vmatprep.subr.bf16.mxu0 0
        %625 = vmatpush1.bf16.msra.mxu0 %v622
        %626 = vmatprep.subr.bf16.mxu0 0
        %627 = vmatpush1.bf16.msra.mxu0 0
        %628 = vmatprep.subr.bf16.mxu0 0
        %629 = vmatpush1.bf16.msra.mxu0 0
        %630 = vmatprep.subr.bf16.mxu0 0
        %631 = vmatpush1.bf16.msra.mxu0 0
        %632 = vmatprep.subr.bf16.mxu0 0
        %633 = vmatpush1.bf16.msra.mxu0 0
        %634 = vmatprep.subr.bf16.mxu0 0
        %635 = vmatpush1.bf16.msra.mxu0 0
        %636 = vmatprep.subr.bf16.mxu0 0
        %637 = vmatpush1.bf16.msra.mxu0 0
        %638 = vmatprep.subr.bf16.mxu0 0
        %639 = vmatpush1.bf16.msra.mxu0 0
        %640 = vmatprep.subr.bf16.mxu0 0
        %641 = vmatpush1.bf16.msra.mxu0 0
        %642 = vmatprep.subr.bf16.mxu0 0
        %643 = vmatpush1.bf16.msra.mxu0 0
        %644 = vmatprep.subr.bf16.mxu0 0
        %645 = vmatpush1.bf16.msra.mxu0 0
        %646 = vmatprep.subr.bf16.mxu0 0
        %647 = vmatpush1.bf16.msra.mxu0 0
        %648 = vmatprep.subr.bf16.mxu0 0
        %649 = vmatpush1.bf16.msra.mxu0 0
        %650 = vmatprep.subr.bf16.mxu0 0
        %651 = vmatpush1.bf16.msra.mxu0 0
        %652 = vmatprep.subr.bf16.mxu0 0
        %653 = vmatpush1.bf16.msra.mxu0 0
        %654 = vmatprep.subr.bf16.mxu0 0
        %655 = vmatpush1.bf16.msra.mxu0 0
        %656 = vmatprep.mubr.bf16.mxu0 0
        %657 = vmatmul.mubr.bf16.gmra.mrb[0].mxu0 %v620
        %v658 = vpop.f32.mrb[0].mxu0
        %v659 = vadd.f32 0.0, %v658
        %v660 = vpop.f32.mrb[0].mxu0
        %v661 = vpop.f32.mrb[0].mxu0
        %v662 = vpop.f32.mrb[0].mxu0
        %663 = vdwg.mxu0
        %v664 = vadd.f32 %v602, %v659
        %665 = vrot.lane.b32.xlu0 %v439, 119
        %v666 = vpop.permute.xlu0 %665
        %667 = vrot.lane.b32.xlu0 %v444, 119
        %v668 = vpop.permute.xlu0 %667
        %vm669 = vcmask 973824
        %v672 = vsel %vm669, %v666, %v668
        %s673 = scalar_lea.vmem %s2, 24
        %v674 = vld [vmem:[%s673] sm:$0xf]
        %v676 = vsel %vm342, %v674, 0
        %v678 = vsel %vm346, %v672, 0
        %680 = vmatprep.subr.bf16.mxu0 0
        %681 = vmatpush1.bf16.msra.mxu0 %v678
        %682 = vmatprep.subr.bf16.mxu0 0
        %683 = vmatpush1.bf16.msra.mxu0 0
        %684 = vmatprep.subr.bf16.mxu0 0
        %685 = vmatpush1.bf16.msra.mxu0 0
        %686 = vmatprep.subr.bf16.mxu0 0
        %687 = vmatpush1.bf16.msra.mxu0 0
        %688 = vmatprep.subr.bf16.mxu0 0
        %689 = vmatpush1.bf16.msra.mxu0 0
        %690 = vmatprep.subr.bf16.mxu0 0
        %691 = vmatpush1.bf16.msra.mxu0 0
        %692 = vmatprep.subr.bf16.mxu0 0
        %693 = vmatpush1.bf16.msra.mxu0 0
        %694 = vmatprep.subr.bf16.mxu0 0
        %695 = vmatpush1.bf16.msra.mxu0 0
        %696 = vmatprep.subr.bf16.mxu0 0
        %697 = vmatpush1.bf16.msra.mxu0 0
        %698 = vmatprep.subr.bf16.mxu0 0
        %699 = vmatpush1.bf16.msra.mxu0 0
        %700 = vmatprep.subr.bf16.mxu0 0
        %701 = vmatpush1.bf16.msra.mxu0 0
        %702 = vmatprep.subr.bf16.mxu0 0
        %703 = vmatpush1.bf16.msra.mxu0 0
        %704 = vmatprep.subr.bf16.mxu0 0
        %705 = vmatpush1.bf16.msra.mxu0 0
        %706 = vmatprep.subr.bf16.mxu0 0
        %707 = vmatpush1.bf16.msra.mxu0 0
        %708 = vmatprep.subr.bf16.mxu0 0
        %709 = vmatpush1.bf16.msra.mxu0 0
        %710 = vmatprep.subr.bf16.mxu0 0
        %711 = vmatpush1.bf16.msra.mxu0 0
        %712 = vmatprep.mubr.bf16.mxu0 0
        %713 = vmatmul.mubr.bf16.gmra.mrb[0].mxu0 %v676
        %v714 = vpop.f32.mrb[0].mxu0
        %v715 = vadd.f32 0.0, %v714
        %v716 = vpop.f32.mrb[0].mxu0
        %v717 = vpop.f32.mrb[0].mxu0
        %v718 = vpop.f32.mrb[0].mxu0
        %719 = vdwg.mxu0
        %v720 = vadd.f32 %v664, %v715
        %v721 = vld [vmem:[%s304] sm:$0xc]
        %722 = vrot.lane.b32.xlu0 %v340, 119
        %v723 = vpop.permute.xlu0 %722
        %v725 = vunpack.c.l.b16 %v721
        %v726 = vpack.c.b16 %v725, %v725
        %727 = vrot.lane.b32.xlu0 %v726, 119
        %v728 = vpop.permute.xlu0 %727
        %v731 = vsel %vm669, %v723, %v728
        %s732 = scalar_lea.vmem %s2, 28
        %v733 = vld [vmem:[%s732] sm:$0xf]
        %v735 = vrot.slane %v731, 2
        %v737 = vsel %vm342, %v733, 0
        %v740 = vsel %vm346, %v735, 0
        %742 = vmatprep.subr.bf16.mxu0 0
        %743 = vmatpush1.bf16.msra.mxu0 %v740
        %744 = vmatprep.subr.bf16.mxu0 0
        %745 = vmatpush1.bf16.msra.mxu0 0
        %746 = vmatprep.subr.bf16.mxu0 0
        %747 = vmatpush1.bf16.msra.mxu0 0
        %748 = vmatprep.subr.bf16.mxu0 0
        %749 = vmatpush1.bf16.msra.mxu0 0
        %750 = vmatprep.subr.bf16.mxu0 0
        %751 = vmatpush1.bf16.msra.mxu0 0
        %752 = vmatprep.subr.bf16.mxu0 0
        %753 = vmatpush1.bf16.msra.mxu0 0
        %754 = vmatprep.subr.bf16.mxu0 0
        %755 = vmatpush1.bf16.msra.mxu0 0
        %756 = vmatprep.subr.bf16.mxu0 0
        %757 = vmatpush1.bf16.msra.mxu0 0
        %758 = vmatprep.subr.bf16.mxu0 0
        %759 = vmatpush1.bf16.msra.mxu0 0
        %760 = vmatprep.subr.bf16.mxu0 0
        %761 = vmatpush1.bf16.msra.mxu0 0
        %762 = vmatprep.subr.bf16.mxu0 0
        %763 = vmatpush1.bf16.msra.mxu0 0
        %764 = vmatprep.subr.bf16.mxu0 0
        %765 = vmatpush1.bf16.msra.mxu0 0
        %766 = vmatprep.subr.bf16.mxu0 0
        %767 = vmatpush1.bf16.msra.mxu0 0
        %768 = vmatprep.subr.bf16.mxu0 0
        %769 = vmatpush1.bf16.msra.mxu0 0
        %770 = vmatprep.subr.bf16.mxu0 0
        %771 = vmatpush1.bf16.msra.mxu0 0
        %772 = vmatprep.subr.bf16.mxu0 0
        %773 = vmatpush1.bf16.msra.mxu0 0
        %774 = vmatprep.mubr.bf16.mxu0 0
        %775 = vmatmul.mubr.bf16.gmra.mrb[0].mxu0 %v737
        %v776 = vpop.f32.mrb[0].mxu0
        %v777 = vadd.f32 0.0, %v776
        %v778 = vpop.f32.mrb[0].mxu0
        %v779 = vpop.f32.mrb[0].mxu0
        %v780 = vpop.f32.mrb[0].mxu0
        %781 = vdwg.mxu0
        %v782 = vadd.f32 %v720, %v777
        %783 = vrot.lane.b32.xlu0 %v439, 118
        %v784 = vpop.permute.xlu0 %783
        %785 = vrot.lane.b32.xlu0 %v444, 118
        %v786 = vpop.permute.xlu0 %785
        %vm787 = vcmask 965632
        %v790 = vsel %vm787, %v784, %v786
        %s791 = scalar_lea.vmem %s2, 32
        %v792 = vld [vmem:[%s791] sm:$0xf]
        %v794 = vsel %vm342, %v792, 0
        %v796 = vsel %vm346, %v790, 0
        %798 = vmatprep.subr.bf16.mxu0 0
        %799 = vmatpush1.bf16.msra.mxu0 %v796
        %800 = vmatprep.subr.bf16.mxu0 0
        %801 = vmatpush1.bf16.msra.mxu0 0
        %802 = vmatprep.subr.bf16.mxu0 0
        %803 = vmatpush1.bf16.msra.mxu0 0
        %804 = vmatprep.subr.bf16.mxu0 0
        %805 = vmatpush1.bf16.msra.mxu0 0
        %806 = vmatprep.subr.bf16.mxu0 0
        %807 = vmatpush1.bf16.msra.mxu0 0
        %808 = vmatprep.subr.bf16.mxu0 0
        %809 = vmatpush1.bf16.msra.mxu0 0
        %810 = vmatprep.subr.bf16.mxu0 0
        %811 = vmatpush1.bf16.msra.mxu0 0
        %812 = vmatprep.subr.bf16.mxu0 0
        %813 = vmatpush1.bf16.msra.mxu0 0
        %814 = vmatprep.subr.bf16.mxu0 0
        %815 = vmatpush1.bf16.msra.mxu0 0
        %816 = vmatprep.subr.bf16.mxu0 0
        %817 = vmatpush1.bf16.msra.mxu0 0
        %818 = vmatprep.subr.bf16.mxu0 0
        %819 = vmatpush1.bf16.msra.mxu0 0
        %820 = vmatprep.subr.bf16.mxu0 0
        %821 = vmatpush1.bf16.msra.mxu0 0
        %822 = vmatprep.subr.bf16.mxu0 0
        %823 = vmatpush1.bf16.msra.mxu0 0
        %824 = vmatprep.subr.bf16.mxu0 0
        %825 = vmatpush1.bf16.msra.mxu0 0
        %826 = vmatprep.subr.bf16.mxu0 0
        %827 = vmatpush1.bf16.msra.mxu0 0
        %828 = vmatprep.subr.bf16.mxu0 0
        %829 = vmatpush1.bf16.msra.mxu0 0
        %830 = vmatprep.mubr.bf16.mxu0 0
        %831 = vmatmul.mubr.bf16.gmra.mrb[0].mxu0 %v794
        %v832 = vpop.f32.mrb[0].mxu0
        %v833 = vadd.f32 0.0, %v832
        %v834 = vpop.f32.mrb[0].mxu0
        %v835 = vpop.f32.mrb[0].mxu0
        %v836 = vpop.f32.mrb[0].mxu0
        %837 = vdwg.mxu0
        %v838 = vadd.f32 %v782, %v833
        %v839 = vld [vmem:[%s3] sm:$0xff]
        %841 = vset.pattern.permute.xlu0 0
        %842 = vperm.xlu0 %841, %v839
        %v843 = vpop.permute.xlu0 %842
        %v845 = vadd.f32 %v838, %v843
        %846 = vst [vmem:[%s330] sm:$0xff] %v845
        %s847 = sand.u32 %s140, 1
        %s848 = scalar_lea.sflag [#allocation5], %s847
        %s849 = sand.u32 %s140, 1
        %s850 = smul.addr %s849, 8
        %s851 = scalar_lea.vmem [#allocation4], %s850
        // Predicated region
        $region119: #{tpu_custom_call.1} parent=109 // pred_check
          %p852 = pneg %p150
        $region120: #{tpu_custom_call.1} parent=109 // pred_check_branch
          %854 = sbr.rel (%p852) target = $region122
        $region121: #{tpu_custom_call.1} parent=109 // pred_region
          %s856 = ssub.s32 128, 128
          %857 = vsyncadd %s848, %s856
          %s858 = sadd.s32 %s23, %s22
          %s859 = smul.addr %s858, 128
          %s860 = scalar_lea.hbm %s4, %s859
          %s862 = sshll.u32 %s851, 4
          %s863 = int_to_ptr.vmem [resolvable:$true] %s862
          %865 = dma.vmem_to_hbm [thread:$0]  %s863, 128, %s860, %s848
        $region122: #{tpu_custom_call.1} parent=109 // pred_fallthru
          _
      $region110: #{tpu_custom_call.1} parent=5 // pred_fallthru
        _
      %p866 = scmp.le.s32.totalorder 2, %s13
      // Predicated region
      $region123: #{tpu_custom_call.1} parent=5 // pred_check
        %p867 = pneg %p866
      $region124: #{tpu_custom_call.1} parent=5 // pred_check_branch
        %869 = sbr.rel (%p867) target = $region126
      $region125: #{tpu_custom_call.1} parent=5 // pred_region
        %s870 = ssub.s32 %s13, 2
        // Predicated region
        $region127: #{tpu_custom_call.1} parent=125 // pred_check
          %p871 = pneg %p156
        $region128: #{tpu_custom_call.1} parent=125 // pred_check_branch
          %873 = sbr.rel (%p871) target = $region130
        $region129: #{tpu_custom_call.1} parent=125 // pred_region
          %s874 = sand.u32 %s141, 1
          %s875 = scalar_lea.sflag [#allocation5], %s874
          %s876 = sand.u32 %s141, 1
          %s877 = smul.addr %s876, 8
          %s878 = scalar_lea.vmem [#allocation4], %s877
          %879 = dma.done %s875, 128
        $region130: #{tpu_custom_call.1} parent=125 // pred_fallthru
          _
      $region126: #{tpu_custom_call.1} parent=5 // pred_fallthru
        _
    $region6: #{tpu_custom_call.1} parent=1 // loop_footer
      %s17 = sadd.s32 1, %s13
    $region7: #{tpu_custom_call.1} parent=1 // loop_footer_branch
      %12 = sbr.rel target = $region3
    $region8: #{tpu_custom_call.1} parent=1 // loop_exit
      _
    %880 = vsyncpa [#allocation5], 1
    %s881 = scalar_lea.sflag [#allocation5], 1
    %882 = vsyncpa %s881, 1

</llo_original>
